<compile_context>
chip_gen: v5e
topology: v5e:2x2
jax: 0.10.0
libtpu: 0.0.40
codegen_flags: <defaults>
</compile_context>

<pallas_src>
import jax
import jax.numpy as jnp
from jax import lax
from jax.experimental import pallas as pl
from jax.experimental.pallas import tpu as pltpu


def _attention_kernel(x_ref, wq_ref, wk_ref, wv_ref, wo_ref, bproj_ref,
                      o_ref, acc_ref):
    h = pl.program_id(1)

    @pl.when(h == 0)
    def _init():
        acc_ref[...] = jnp.zeros_like(acc_ref)

    x = x_ref[0].astype(jnp.bfloat16)        # (N, C)   bf16 operand for MXU
    wq = wq_ref[0]                           # (C, hd)  bf16, qk scale pre-folded
    wk = wk_ref[0]                           # (C, hd)  bf16
    wv = wv_ref[0]                           # (C, hd)  bf16
    wo = wo_ref[0]                           # (hd, C)  bf16, rows of W_proj for head h

    # Per-head projections (f32 accumulation on the MXU).
    q = jnp.dot(x, wq, preferred_element_type=jnp.float32)      # (N, hd), pre-scaled
    k = jnp.dot(x, wk, preferred_element_type=jnp.float32)      # (N, hd)
    v = jnp.dot(x, wv, preferred_element_type=jnp.float32)      # (N, hd)

    # Scores: contract the last dims directly — no explicit k transpose.
    s = lax.dot_general(q.astype(jnp.bfloat16), k.astype(jnp.bfloat16),
                        dimension_numbers=(((1,), (1,)), ((), ())),
                        preferred_element_type=jnp.float32)      # (N, N)

    # Numerically stable softmax; denominator via approx reciprocal (EUP).
    s = s - jnp.max(s, axis=-1, keepdims=True)
    p = jnp.exp(s)
    inv = pl.reciprocal(jnp.sum(p, axis=-1, keepdims=True), approx=True)
    p = p * inv
    # TODO(synk): attn_drop / proj_drop are identity at default p=0.0; no RNG dropout implemented.

    o_h = jnp.dot(p.astype(jnp.bfloat16), v.astype(jnp.bfloat16),
                  preferred_element_type=jnp.float32)            # (N, hd)

    # Per-head slice of the output projection; summing over heads is exactly
    # equivalent to concat(heads) @ W_proj.
    acc_ref[...] += jnp.dot(o_h.astype(jnp.bfloat16), wo,
                            preferred_element_type=jnp.float32)  # (N, C)

    @pl.when(h == pl.num_programs(1) - 1)
    def _finalize():
        o_ref[0] = (acc_ref[...] + bproj_ref[...]).astype(o_ref.dtype)


def attention(x, w_qkv, w_proj, b_proj, *, num_heads):
    """x: (B, N, C) f32. w_qkv: (C, 3C). w_proj: (C, C). b_proj: (C,)."""
    B, N, C = x.shape
    assert C % num_heads == 0
    hd = C // num_heads
    scale = hd ** -0.5

    # One-time weight prep (would live at weight-load time in a real model):
    # split into per-head projections, fold the qk scale into W_q, cast to bf16.
    def split_heads(w):                      # (C, C) -> (H, C, hd)
        return w.reshape(C, num_heads, hd).transpose(1, 0, 2)

    wq = (split_heads(w_qkv[:, 0 * C:1 * C]) * scale).astype(jnp.bfloat16)
    wk = split_heads(w_qkv[:, 1 * C:2 * C]).astype(jnp.bfloat16)
    wv = split_heads(w_qkv[:, 2 * C:3 * C]).astype(jnp.bfloat16)
    wo = w_proj.reshape(num_heads, hd, C).astype(jnp.bfloat16)   # (H, hd, C)
    b2 = b_proj.reshape(1, C).astype(jnp.float32)

    return pl.pallas_call(
        _attention_kernel,
        out_shape=jax.ShapeDtypeStruct((B, N, C), x.dtype),
        grid_spec=pltpu.PrefetchScalarGridSpec(
            num_scalar_prefetch=0,
            grid=(B, num_heads),
            in_specs=[
                pl.BlockSpec((1, N, C), lambda b, h: (b, 0, 0)),    # x (reused over h)
                pl.BlockSpec((1, C, hd), lambda b, h: (h, 0, 0)),   # W_q (scale folded)
                pl.BlockSpec((1, C, hd), lambda b, h: (h, 0, 0)),   # W_k
                pl.BlockSpec((1, C, hd), lambda b, h: (h, 0, 0)),   # W_v
                pl.BlockSpec((1, hd, C), lambda b, h: (h, 0, 0)),   # W_proj rows for head h
                pl.BlockSpec((1, C), lambda b, h: (0, 0)),          # proj bias
            ],
            out_specs=pl.BlockSpec((1, N, C), lambda b, h: (b, 0, 0)),
            scratch_shapes=[pltpu.VMEM((N, C), jnp.float32)],       # output accumulator
        ),
        compiler_params=pltpu.CompilerParams(
            dimension_semantics=("parallel", "arbitrary"),
            vmem_limit_bytes=32 * 1024 * 1024,
        ),
    )(x, wq, wk, wv, wo, b2)


def attention_ref(x, w_qkv, w_proj, b_proj, *, num_heads):
    """Pure-JAX f32 reference mirroring the PyTorch forward exactly."""
    B, N, C = x.shape
    hd = C // num_heads
    scale = hd ** -0.5
    qkv = x @ w_qkv                                       # (B, N, 3C)
    qkv = qkv.reshape(B, N, 3, num_heads, hd).transpose(2, 0, 3, 1, 4)
    q, k, v = qkv[0], qkv[1], qkv[2]                      # (B, H, N, hd)
    q = q * scale
    attn = jax.nn.softmax(q @ jnp.swapaxes(k, -2, -1), axis=-1)
    out = (attn @ v).transpose(0, 2, 1, 3).reshape(B, N, C)
    return out @ w_proj + b_proj


if __name__ == "__main__":
    # Small but lane/sublane-aligned shapes (C % 128 == 0, N % 8 == 0) so the
    # output stores are lane-dense.
    B, N, C = 2, 64, 128
    num_heads = 4

    key = jax.random.PRNGKey(0)
    kx, kqkv, kproj, kb = jax.random.split(key, 4)

    x = jax.random.normal(kx, (B, N, C), dtype=jnp.float32)
    # Deterministic synthetic parameters (nn.Linear-like scale).
    w_qkv = jax.random.normal(kqkv, (C, 3 * C), dtype=jnp.float32) * (C ** -0.5)
    w_proj = jax.random.normal(kproj, (C, C), dtype=jnp.float32) * (C ** -0.5)
    b_proj = jax.random.normal(kb, (C,), dtype=jnp.float32) * 0.01

    out = attention(x, w_qkv, w_proj, b_proj, num_heads=num_heads)
    out = jax.block_until_ready(out)

    ref = attention_ref(x, w_qkv, w_proj, b_proj, num_heads=num_heads)
    assert out.shape == (B, N, C)
    # bf16 MXU operands (f32 accumulation) + approx reciprocal -> loosened tolerance.
    assert jnp.allclose(out, ref, atol=5e-2, rtol=5e-2), (
        "mismatch vs reference: max abs err "
        f"{float(jnp.max(jnp.abs(out - ref)))}")

    print("KERNEL_OK")
</pallas_src>

<mosaic_0001>
module attributes {stable_mosaic.version = 11 : i64} {
  func.func @_attention_kernel(%arg0: i32, %arg1: i32, %arg2: memref<1x64x128xf32, #tpu.memory_space<vmem>>, %arg3: memref<1x128x32xbf16, #tpu.memory_space<vmem>>, %arg4: memref<1x128x32xbf16, #tpu.memory_space<vmem>>, %arg5: memref<1x128x32xbf16, #tpu.memory_space<vmem>>, %arg6: memref<1x32x128xbf16, #tpu.memory_space<vmem>>, %arg7: memref<1x128xf32, #tpu.memory_space<vmem>>, %arg8: memref<1x64x128xf32, #tpu.memory_space<vmem>>, %arg9: memref<64x128xf32, #tpu.memory_space<vmem>>) attributes {dimension_semantics = [#tpu.dimension_semantics<parallel>, #tpu.dimension_semantics<arbitrary>], iteration_bounds = array<i64: 2, 4>, scalar_prefetch = 0 : i64, scratch_operands = 1 : i64, tpu.core_type = #tpu.core_type<tc>, window_params = [{transform_indices = @transform_0, window_bounds = array<i64: 1, 64, 128>}, {transform_indices = @transform_1, window_bounds = array<i64: 1, 128, 32>}, {transform_indices = @transform_2, window_bounds = array<i64: 1, 128, 32>}, {transform_indices = @transform_3, window_bounds = array<i64: 1, 128, 32>}, {transform_indices = @transform_4, window_bounds = array<i64: 1, 32, 128>}, {pipeline_mode = #tpu.pipeline_mode<synchronous>, transform_indices = @transform_5, window_bounds = array<i64: 1, 128>}, {transform_indices = @transform_6, window_bounds = array<i64: 1, 64, 128>}]} {
    %c0_i32 = arith.constant 0 : i32
    %0 = arith.cmpi eq, %arg1, %c0_i32 : i32
    %1 = arith.extui %0 : i1 to i32
    %c0_i32_0 = arith.constant 0 : i32
    %2 = arith.cmpi ne, %1, %c0_i32_0 : i32
    scf.if %2 {
      %cst_27 = arith.constant 0.000000e+00 : f32
      %41 = vector.broadcast %cst_27 : f32 to vector<64x128xf32>
      %c0_28 = arith.constant 0 : index
      %c0_29 = arith.constant 0 : index
      %42 = vector.load %arg9[%c0_28, %c0_29] : memref<64x128xf32, #tpu.memory_space<vmem>>, vector<64x128xf32>
      tpu.vector_store %arg9[%c0_28, %c0_29], %41 {strides = array<i32>} : memref<64x128xf32, #tpu.memory_space<vmem>>, vector<64x128xf32>,
    } else {
    }
    %c0 = arith.constant 0 : index
    %c0_1 = arith.constant 0 : index
    %c0_2 = arith.constant 0 : index
    %3 = vector.load %arg2[%c0, %c0_1, %c0_2] : memref<1x64x128xf32, #tpu.memory_space<vmem>>, vector<1x64x128xf32>
    %4 = vector.shape_cast %3 : vector<1x64x128xf32> to vector<64x128xf32>
    %5 = arith.truncf %4 : vector<64x128xf32> to vector<64x128xbf16>
    %c0_3 = arith.constant 0 : index
    %c0_4 = arith.constant 0 : index
    %c0_5 = arith.constant 0 : index
    %6 = vector.load %arg3[%c0_3, %c0_4, %c0_5] : memref<1x128x32xbf16, #tpu.memory_space<vmem>>, vector<1x128x32xbf16>
    %7 = vector.shape_cast %6 : vector<1x128x32xbf16> to vector<128x32xbf16>
    %c0_6 = arith.constant 0 : index
    %c0_7 = arith.constant 0 : index
    %c0_8 = arith.constant 0 : index
    %8 = vector.load %arg4[%c0_6, %c0_7, %c0_8] : memref<1x128x32xbf16, #tpu.memory_space<vmem>>, vector<1x128x32xbf16>
    %9 = vector.shape_cast %8 : vector<1x128x32xbf16> to vector<128x32xbf16>
    %c0_9 = arith.constant 0 : index
    %c0_10 = arith.constant 0 : index
    %c0_11 = arith.constant 0 : index
    %10 = vector.load %arg5[%c0_9, %c0_10, %c0_11] : memref<1x128x32xbf16, #tpu.memory_space<vmem>>, vector<1x128x32xbf16>
    %11 = vector.shape_cast %10 : vector<1x128x32xbf16> to vector<128x32xbf16>
    %c0_12 = arith.constant 0 : index
    %c0_13 = arith.constant 0 : index
    %c0_14 = arith.constant 0 : index
    %12 = vector.load %arg6[%c0_12, %c0_13, %c0_14] : memref<1x32x128xbf16, #tpu.memory_space<vmem>>, vector<1x32x128xbf16>
    %13 = vector.shape_cast %12 : vector<1x32x128xbf16> to vector<32x128xbf16>
    %cst = arith.constant dense<0.000000e+00> : vector<64x32xf32>
    %14 = tpu.matmul %5, %7, %cst {dimension_numbers = #tpu.dot_dimension_numbers<[1], [0], [0], [1], [0, 0, 1, 1], [], []>} : vector<64x128xbf16>, vector<128x32xbf16>, vector<64x32xf32> -> vector<64x32xf32>
    %cst_15 = arith.constant dense<0.000000e+00> : vector<64x32xf32>
    %15 = tpu.matmul %5, %9, %cst_15 {dimension_numbers = #tpu.dot_dimension_numbers<[1], [0], [0], [1], [0, 0, 1, 1], [], []>} : vector<64x128xbf16>, vector<128x32xbf16>, vector<64x32xf32> -> vector<64x32xf32>
    %cst_16 = arith.constant dense<0.000000e+00> : vector<64x32xf32>
    %16 = tpu.matmul %5, %11, %cst_16 {dimension_numbers = #tpu.dot_dimension_numbers<[1], [0], [0], [1], [0, 0, 1, 1], [], []>} : vector<64x128xbf16>, vector<128x32xbf16>, vector<64x32xf32> -> vector<64x32xf32>
    %17 = arith.truncf %14 : vector<64x32xf32> to vector<64x32xbf16>
    %18 = arith.truncf %15 : vector<64x32xf32> to vector<64x32xbf16>
    %cst_17 = arith.constant dense<0.000000e+00> : vector<64x64xf32>
    %19 = tpu.matmul %17, %18, %cst_17 {dimension_numbers = #tpu.dot_dimension_numbers<[1], [1], [0], [0], [0, 0, 1, 0], [], []>} : vector<64x32xbf16>, vector<64x32xbf16>, vector<64x64xf32> -> vector<64x64xf32>
    %cst_18 = arith.constant dense<0xFF800000> : vector<64xf32>
    %20 = vector.multi_reduction <maximumf>, %19, %cst_18 [1] : vector<64x64xf32> to vector<64xf32>
    %21 = vector.shape_cast %20 : vector<64xf32> to vector<64x1xf32>
    %22 = vector.broadcast %21 : vector<64x1xf32> to vector<64x64xf32>
    %23 = arith.subf %19, %22 : vector<64x64xf32>
    %24 = math.exp %23 : vector<64x64xf32>
    %cst_19 = arith.constant dense<0.000000e+00> : vector<64xf32>
    %25 = vector.multi_reduction <add>, %24, %cst_19 [1] : vector<64x64xf32> to vector<64xf32>
    %26 = vector.shape_cast %25 : vector<64xf32> to vector<64x1xf32>
    %27 = tpu.reciprocal %26 {approx = true} : vector<64x1xf32> -> vector<64x1xf32>
    %28 = vector.broadcast %27 : vector<64x1xf32> to vector<64x64xf32>
    %29 = arith.mulf %24, %28 : vector<64x64xf32>
    %30 = arith.truncf %29 : vector<64x64xf32> to vector<64x64xbf16>
    %31 = arith.truncf %16 : vector<64x32xf32> to vector<64x32xbf16>
    %cst_20 = arith.constant dense<0.000000e+00> : vector<64x32xf32>
    %32 = tpu.matmul %30, %31, %cst_20 {dimension_numbers = #tpu.dot_dimension_numbers<[1], [0], [0], [1], [0, 0, 1, 1], [], []>} : vector<64x64xbf16>, vector<64x32xbf16>, vector<64x32xf32> -> vector<64x32xf32>
    %c0_21 = arith.constant 0 : index
    %c0_22 = arith.constant 0 : index
    %33 = vector.load %arg9[%c0_21, %c0_22] : memref<64x128xf32, #tpu.memory_space<vmem>>, vector<64x128xf32>
    %34 = arith.truncf %32 : vector<64x32xf32> to vector<64x32xbf16>
    %cst_23 = arith.constant dense<0.000000e+00> : vector<64x128xf32>
    %35 = tpu.matmul %34, %13, %cst_23 {dimension_numbers = #tpu.dot_dimension_numbers<[1], [0], [0], [1], [0, 0, 1, 1], [], []>} : vector<64x32xbf16>, vector<32x128xbf16>, vector<64x128xf32> -> vector<64x128xf32>
    %36 = arith.addf %33, %35 : vector<64x128xf32>
    %c0_24 = arith.constant 0 : index
    %c0_25 = arith.constant 0 : index
    %37 = vector.load %arg9[%c0_24, %c0_25] : memref<64x128xf32, #tpu.memory_space<vmem>>, vector<64x128xf32>
    tpu.vector_store %arg9[%c0_24, %c0_25], %36 {strides = array<i32>} : memref<64x128xf32, #tpu.memory_space<vmem>>, vector<64x128xf32>,
    %c3_i32 = arith.constant 3 : i32
    %38 = arith.cmpi eq, %arg1, %c3_i32 : i32
    %39 = arith.extui %38 : i1 to i32
    %c0_i32_26 = arith.constant 0 : i32
    %40 = arith.cmpi ne, %39, %c0_i32_26 : i32
    scf.if %40 {
      %c0_27 = arith.constant 0 : index
      %c0_28 = arith.constant 0 : index
      %41 = vector.load %arg9[%c0_27, %c0_28] : memref<64x128xf32, #tpu.memory_space<vmem>>, vector<64x128xf32>
      %c0_29 = arith.constant 0 : index
      %c0_30 = arith.constant 0 : index
      %42 = vector.load %arg7[%c0_29, %c0_30] : memref<1x128xf32, #tpu.memory_space<vmem>>, vector<1x128xf32>
      %43 = vector.broadcast %42 : vector<1x128xf32> to vector<64x128xf32>
      %44 = arith.addf %41, %43 : vector<64x128xf32>
      %c0_31 = arith.constant 0 : index
      %c0_32 = arith.constant 0 : index
      %c0_33 = arith.constant 0 : index
      %45 = vector.load %arg8[%c0_31, %c0_32, %c0_33] : memref<1x64x128xf32, #tpu.memory_space<vmem>>, vector<1x64x128xf32>
      %46 = vector.shape_cast %45 : vector<1x64x128xf32> to vector<64x128xf32>
      %47 = vector.shape_cast %44 : vector<64x128xf32> to vector<1x64x128xf32>
      tpu.vector_store %arg8[%c0_31, %c0_32, %c0_33], %47 {strides = array<i32>} : memref<1x64x128xf32, #tpu.memory_space<vmem>>, vector<1x64x128xf32>,
    } else {
    }
    return
  }
  func.func @transform_0(%arg0: i32, %arg1: i32) -> (i32, i32, i32) {
    %c0_i32 = arith.constant 0 : i32
    %c0_i32_0 = arith.constant 0 : i32
    %c0_i32_1 = arith.constant 0 : i32
    return %arg0, %c0_i32, %c0_i32_0 : i32, i32, i32
  }
  func.func @transform_1(%arg0: i32, %arg1: i32) -> (i32, i32, i32) {
    %c0_i32 = arith.constant 0 : i32
    %c0_i32_0 = arith.constant 0 : i32
    %c0_i32_1 = arith.constant 0 : i32
    return %arg1, %c0_i32, %c0_i32_0 : i32, i32, i32
  }
  func.func @transform_2(%arg0: i32, %arg1: i32) -> (i32, i32, i32) {
    %c0_i32 = arith.constant 0 : i32
    %c0_i32_0 = arith.constant 0 : i32
    %c0_i32_1 = arith.constant 0 : i32
    return %arg1, %c0_i32, %c0_i32_0 : i32, i32, i32
  }
  func.func @transform_3(%arg0: i32, %arg1: i32) -> (i32, i32, i32) {
    %c0_i32 = arith.constant 0 : i32
    %c0_i32_0 = arith.constant 0 : i32
    %c0_i32_1 = arith.constant 0 : i32
    return %arg1, %c0_i32, %c0_i32_0 : i32, i32, i32
  }
  func.func @transform_4(%arg0: i32, %arg1: i32) -> (i32, i32, i32) {
    %c0_i32 = arith.constant 0 : i32
    %c0_i32_0 = arith.constant 0 : i32
    %c0_i32_1 = arith.constant 0 : i32
    return %arg1, %c0_i32, %c0_i32_0 : i32, i32, i32
  }
  func.func @transform_5(%arg0: i32, %arg1: i32) -> (i32, i32) {
    %c0_i32 = arith.constant 0 : i32
    %c0_i32_0 = arith.constant 0 : i32
    %c0_i32_1 = arith.constant 0 : i32
    return %c0_i32, %c0_i32_0 : i32, i32
  }
  func.func @transform_6(%arg0: i32, %arg1: i32) -> (i32, i32, i32) {
    %c0_i32 = arith.constant 0 : i32
    %c0_i32_0 = arith.constant 0 : i32
    %c0_i32_1 = arith.constant 0 : i32
    return %arg0, %c0_i32, %c0_i32_0 : i32, i32, i32
  }
}

</mosaic_0001>

<llo_original>
// kernel: tpu_custom_call.1
$region0: #{tpu_custom_call.1}
  #allocation0 [shape = 'u32[]', space=smem, size = 0x4, offset = 0x4, fixed_abs, tag = 'smem constant byte address 0x4 - core index']
  #allocation1 [shape = 'u32[72,128]{1,0:T(1,128)}', space=vmem, size = 0x9000, scoped, tag = 'internal scratch']
  #allocation2 [shape = 'f32[64,128]{1,0:T(8,128)}', space=vmem, size = 0x8000, scoped, tag = 'scratch operand']
  %s0 = inlined_call_operand.vmem [shape: f32[2,64,128], index: 0, kind: input, shape index: {}]
  %s1 = inlined_call_operand.vmem [shape: bf16[4,128,32], index: 1, kind: input, shape index: {}]
  %s2 = inlined_call_operand.vmem [shape: bf16[4,128,32], index: 2, kind: input, shape index: {}]
  %s3 = inlined_call_operand.vmem [shape: bf16[4,128,32], index: 3, kind: input, shape index: {}]
  %s4 = inlined_call_operand.vmem [shape: bf16[4,32,128], index: 4, kind: input, shape index: {}]
  %s5 = inlined_call_operand.vmem [shape: f32[1,128], index: 5, kind: input, shape index: {}]
  %s6 = inlined_call_operand.hbm [shape: f32[2,64,128], index: 6, kind: output, shape index: {}]
  %s7 = sld [smem:[#allocation0]]
  $region65: #{tpu_custom_call.1} parent=0
    _
  %s9 = ssub.s32 1, %s7
  %s10 = scalar_select 0, %s9, %s7
  $region1: #{tpu_custom_call.1} parent=0
    #allocation3 [shape = 'u8[65536]{0}', space=vmem, size = 0x10000, scoped, tag = 'output window, operand 0']
    #allocation4 [shape = 's32[2]{0}', space=sflag, size = 0x8, scoped, tag = 'scoped memory for tpu_custom_call.1']
    %11 = vsyncpa [#allocation4], 0
    %s12 = scalar_lea.sflag [#allocation4], 1
    %13 = vsyncpa %s12, 0
    loop: start=0, step=1, limit=10
    $region2: #{tpu_custom_call.1} parent=1 // loop_pre_header
      _
    $region3: #{tpu_custom_call.1} parent=1 // loop_header
      %s15 = sphi 0, %s19
      %p16 = scmp.ge.s32.totalorder %s15, 10
      %s22 = sphi 0, %s34
      %s23 = sphi 0, %s30
      %s24 = sphi 0, %s22
      %s25 = sphi 0, %s23
      %s26 = sphi 0, %s24
      %s27 = sphi 0, %s25
      %s37 = sphi 0, %s39
      %s40 = sphi 0, %s37
      %s41 = sphi 0, %s40
      %s57 = sphi 0, %s41
      %s63 = sphi 0, %s65
      %s66 = sphi 0, %s63
      %s67 = sphi 0, %s66
      %s83 = sphi 0, %s67
      %s89 = sphi 0, %s91
      %s92 = sphi 0, %s89
      %s93 = sphi 0, %s92
      %s109 = sphi 0, %s93
      %s115 = sphi 0, %s117
      %s118 = sphi 0, %s115
      %s119 = sphi 0, %s118
      %s135 = sphi 0, %s119
      %s141 = sphi 0, %s143
      %s144 = sphi 0, %s141
      %s145 = sphi 0, %s144
      %s161 = sphi 0, %s145
      %s165 = sphi 0, %s165
      %s167 = sphi 0, %s165
      %s168 = sphi 0, %s167
      %s182 = sphi 0, %s168
      %s188 = sphi 0, %s190
      %s191 = sphi 0, %s188
      %s192 = sphi 0, %s191
      %s208 = sphi 0, %s192
    $region4: #{tpu_custom_call.1} parent=1 // loop_header_branch
      %18 = sbr.rel (%p16) target = $region8
    $region5: #{tpu_custom_call.1} parent=1 // loop_body
      %s20 = ssub.s32 %s15, 1
      %s21 = ssub.s32 %s15, 2
      %s28 = sadd.s32 1, %s23
      %p29 = scmp.ge.s32.totalorder %s28, 4
      %s30 = scalar_select %p29, 0, %s28
      %s31 = sadd.s32 1, %s22
      %s32 = scalar_select %p29, %s31, %s22
      %p33 = scmp.ge.s32.totalorder %s32, 2
      %s34 = scalar_select %p33, 0, %s32
      %s35 = ssub.s32 %s22, %s34
      %p36 = scmp.eq.s32.totalorder %s35, 0
      %s38 = sadd.s32 %s37, 1
      %s39 = scalar_select %p36, %s37, %s38
      %p42 = pneg %p36
      %p43 = scmp.eq.s32.totalorder %s15, 7
      %p44 = por %p42, %p43
      %p45 = scmp.ne.s32.totalorder %s37, %s40
      %p46 = scmp.eq.s32.totalorder %s15, 0
      %p47 = por %p45, %p46
      %p48 = scmp.ne.s32.totalorder %s37, %s40
      %p49 = scmp.eq.s32.totalorder %s20, 7
      %p50 = por %p48, %p49
      %p51 = scmp.ne.s32.totalorder %s40, %s41
      %p52 = scmp.eq.s32.totalorder %s20, 0
      %p53 = por %p51, %p52
      %p54 = scmp.ne.s32.totalorder %s40, %s41
      %p55 = scmp.eq.s32.totalorder %s21, 7
      %p56 = por %p54, %p55
      %p58 = scmp.ne.s32.totalorder %s41, %s57
      %p59 = scmp.eq.s32.totalorder %s21, 0
      %p60 = por %p58, %p59
      %s61 = ssub.s32 %s23, %s30
      %p62 = scmp.eq.s32.totalorder %s61, 0
      %s64 = sadd.s32 %s63, 1
      %s65 = scalar_select %p62, %s63, %s64
      %p68 = pneg %p62
      %p69 = scmp.eq.s32.totalorder %s15, 7
      %p70 = por %p68, %p69
      %p71 = scmp.ne.s32.totalorder %s63, %s66
      %p72 = scmp.eq.s32.totalorder %s15, 0
      %p73 = por %p71, %p72
      %p74 = scmp.ne.s32.totalorder %s63, %s66
      %p75 = scmp.eq.s32.totalorder %s20, 7
      %p76 = por %p74, %p75
      %p77 = scmp.ne.s32.totalorder %s66, %s67
      %p78 = scmp.eq.s32.totalorder %s20, 0
      %p79 = por %p77, %p78
      %p80 = scmp.ne.s32.totalorder %s66, %s67
      %p81 = scmp.eq.s32.totalorder %s21, 7
      %p82 = por %p80, %p81
      %p84 = scmp.ne.s32.totalorder %s67, %s83
      %p85 = scmp.eq.s32.totalorder %s21, 0
      %p86 = por %p84, %p85
      %s87 = ssub.s32 %s23, %s30
      %p88 = scmp.eq.s32.totalorder %s87, 0
      %s90 = sadd.s32 %s89, 1
      %s91 = scalar_select %p88, %s89, %s90
      %p94 = pneg %p88
      %p95 = scmp.eq.s32.totalorder %s15, 7
      %p96 = por %p94, %p95
      %p97 = scmp.ne.s32.totalorder %s89, %s92
      %p98 = scmp.eq.s32.totalorder %s15, 0
      %p99 = por %p97, %p98
      %p100 = scmp.ne.s32.totalorder %s89, %s92
      %p101 = scmp.eq.s32.totalorder %s20, 7
      %p102 = por %p100, %p101
      %p103 = scmp.ne.s32.totalorder %s92, %s93
      %p104 = scmp.eq.s32.totalorder %s20, 0
      %p105 = por %p103, %p104
      %p106 = scmp.ne.s32.totalorder %s92, %s93
      %p107 = scmp.eq.s32.totalorder %s21, 7
      %p108 = por %p106, %p107
      %p110 = scmp.ne.s32.totalorder %s93, %s109
      %p111 = scmp.eq.s32.totalorder %s21, 0
      %p112 = por %p110, %p111
      %s113 = ssub.s32 %s23, %s30
      %p114 = scmp.eq.s32.totalorder %s113, 0
      %s116 = sadd.s32 %s115, 1
      %s117 = scalar_select %p114, %s115, %s116
      %p120 = pneg %p114
      %p121 = scmp.eq.s32.totalorder %s15, 7
      %p122 = por %p120, %p121
      %p123 = scmp.ne.s32.totalorder %s115, %s118
      %p124 = scmp.eq.s32.totalorder %s15, 0
      %p125 = por %p123, %p124
      %p126 = scmp.ne.s32.totalorder %s115, %s118
      %p127 = scmp.eq.s32.totalorder %s20, 7
      %p128 = por %p126, %p127
      %p129 = scmp.ne.s32.totalorder %s118, %s119
      %p130 = scmp.eq.s32.totalorder %s20, 0
      %p131 = por %p129, %p130
      %p132 = scmp.ne.s32.totalorder %s118, %s119
      %p133 = scmp.eq.s32.totalorder %s21, 7
      %p134 = por %p132, %p133
      %p136 = scmp.ne.s32.totalorder %s119, %s135
      %p137 = scmp.eq.s32.totalorder %s21, 0
      %p138 = por %p136, %p137
      %s139 = ssub.s32 %s23, %s30
      %p140 = scmp.eq.s32.totalorder %s139, 0
      %s142 = sadd.s32 %s141, 1
      %s143 = scalar_select %p140, %s141, %s142
      %p146 = pneg %p140
      %p147 = scmp.eq.s32.totalorder %s15, 7
      %p148 = por %p146, %p147
      %p149 = scmp.ne.s32.totalorder %s141, %s144
      %p150 = scmp.eq.s32.totalorder %s15, 0
      %p151 = por %p149, %p150
      %p152 = scmp.ne.s32.totalorder %s141, %s144
      %p153 = scmp.eq.s32.totalorder %s20, 7
      %p154 = por %p152, %p153
      %p155 = scmp.ne.s32.totalorder %s144, %s145
      %p156 = scmp.eq.s32.totalorder %s20, 0
      %p157 = por %p155, %p156
      %p158 = scmp.ne.s32.totalorder %s144, %s145
      %p159 = scmp.eq.s32.totalorder %s21, 7
      %p160 = por %p158, %p159
      %p162 = scmp.ne.s32.totalorder %s145, %s161
      %p163 = scmp.eq.s32.totalorder %s21, 0
      %p164 = por %p162, %p163
      %s166 = sadd.s32 %s165, 1
      %p169 = scmp.eq.s32.totalorder %s15, 7
      %p170 = scmp.ne.s32.totalorder %s165, %s167
      %p171 = scmp.eq.s32.totalorder %s15, 0
      %p172 = por %p170, %p171
      %p173 = scmp.ne.s32.totalorder %s165, %s167
      %p174 = scmp.eq.s32.totalorder %s20, 7
      %p175 = por %p173, %p174
      %p176 = scmp.ne.s32.totalorder %s167, %s168
      %p177 = scmp.eq.s32.totalorder %s20, 0
      %p178 = por %p176, %p177
      %p179 = scmp.ne.s32.totalorder %s167, %s168
      %p180 = scmp.eq.s32.totalorder %s21, 7
      %p181 = por %p179, %p180
      %p183 = scmp.ne.s32.totalorder %s168, %s182
      %p184 = scmp.eq.s32.totalorder %s21, 0
      %p185 = por %p183, %p184
      %s186 = ssub.s32 %s22, %s34
      %p187 = scmp.eq.s32.totalorder %s186, 0
      %s189 = sadd.s32 %s188, 1
      %s190 = scalar_select %p187, %s188, %s189
      %p193 = pneg %p187
      %p194 = scmp.eq.s32.totalorder %s15, 7
      %p195 = por %p193, %p194
      %p196 = scmp.ne.s32.totalorder %s188, %s191
      %p197 = scmp.eq.s32.totalorder %s15, 0
      %p198 = por %p196, %p197
      %p199 = scmp.ne.s32.totalorder %s188, %s191
      %p200 = scmp.eq.s32.totalorder %s20, 7
      %p201 = por %p199, %p200
      %p202 = scmp.ne.s32.totalorder %s191, %s192
      %p203 = scmp.eq.s32.totalorder %s20, 0
      %p204 = por %p202, %p203
      %p205 = scmp.ne.s32.totalorder %s191, %s192
      %p206 = scmp.eq.s32.totalorder %s21, 7
      %p207 = por %p205, %p206
      %p209 = scmp.ne.s32.totalorder %s192, %s208
      %p210 = scmp.eq.s32.totalorder %s21, 0
      %p211 = por %p209, %p210
      %p212 = scmp.le.s32.totalorder 1, %s15
      %p213 = scmp.lt.s32.totalorder %s15, 9
      %p214 = pnand %p212, %p213
      %p215 = pneg %p214
      // Predicated region
      $region9: #{tpu_custom_call.1} parent=5 // pred_check
        _
      $region10: #{tpu_custom_call.1} parent=5 // pred_check_branch
        %217 = sbr.rel (%p214) target = $region12
      $region11: #{tpu_custom_call.1} parent=5 // pred_region
        %s218 = ssub.s32 %s15, 1
        // Predicated region
        $region13: #{tpu_custom_call.1} parent=11 // pred_check
          %p219 = pneg %p178
        $region14: #{tpu_custom_call.1} parent=11 // pred_check_branch
          %221 = sbr.rel (%p219) target = $region16
        $region15: #{tpu_custom_call.1} parent=11 // pred_region
          _
        $region16: #{tpu_custom_call.1} parent=11 // pred_fallthru
          _
      $region12: #{tpu_custom_call.1} parent=5 // pred_fallthru
        _
      %p222 = scmp.lt.s32.totalorder %s15, 8
      // Predicated region
      $region17: #{tpu_custom_call.1} parent=5 // pred_check
        %p223 = pneg %p222
      $region18: #{tpu_custom_call.1} parent=5 // pred_check_branch
        %225 = sbr.rel (%p223) target = $region20
      $region19: #{tpu_custom_call.1} parent=5 // pred_region
        // Predicated region
        $region21: #{tpu_custom_call.1} parent=19 // pred_check
          %p226 = pneg %p47
        $region22: #{tpu_custom_call.1} parent=19 // pred_check_branch
          %228 = sbr.rel (%p226) target = $region24
        $region23: #{tpu_custom_call.1} parent=19 // pred_region
          %p229 = scmp.lt.s32.totalorder %s22, 1
          %s230 = scalar_select %p229, %s22, 1
          %s231 = smul.addr %s230, 8
          %s232 = smul.addr %s231, 8
          %s233 = scalar_lea.vmem %s0, %s232
        $region24: #{tpu_custom_call.1} parent=19 // pred_fallthru
          _
        // Predicated region
        $region25: #{tpu_custom_call.1} parent=19 // pred_check
          %p234 = pneg %p73
        $region26: #{tpu_custom_call.1} parent=19 // pred_check_branch
          %236 = sbr.rel (%p234) target = $region28
        $region27: #{tpu_custom_call.1} parent=19 // pred_region
          %p237 = scmp.lt.s32.totalorder %s23, 3
          %s238 = scalar_select %p237, %s23, 3
          %s239 = smul.addr %s238, 16
          %s240 = smul.addr %s239, 4
          %s241 = scalar_lea.vmem %s1, %s240
        $region28: #{tpu_custom_call.1} parent=19 // pred_fallthru
          _
        // Predicated region
        $region29: #{tpu_custom_call.1} parent=19 // pred_check
          %p242 = pneg %p99
        $region30: #{tpu_custom_call.1} parent=19 // pred_check_branch
          %244 = sbr.rel (%p242) target = $region32
        $region31: #{tpu_custom_call.1} parent=19 // pred_region
          %p245 = scmp.lt.s32.totalorder %s23, 3
          %s246 = scalar_select %p245, %s23, 3
          %s247 = smul.addr %s246, 16
          %s248 = smul.addr %s247, 4
          %s249 = scalar_lea.vmem %s2, %s248
        $region32: #{tpu_custom_call.1} parent=19 // pred_fallthru
          _
        // Predicated region
        $region33: #{tpu_custom_call.1} parent=19 // pred_check
          %p250 = pneg %p125
        $region34: #{tpu_custom_call.1} parent=19 // pred_check_branch
          %252 = sbr.rel (%p250) target = $region36
        $region35: #{tpu_custom_call.1} parent=19 // pred_region
          %p253 = scmp.lt.s32.totalorder %s23, 3
          %s254 = scalar_select %p253, %s23, 3
          %s255 = smul.addr %s254, 16
          %s256 = smul.addr %s255, 4
          %s257 = scalar_lea.vmem %s3, %s256
        $region36: #{tpu_custom_call.1} parent=19 // pred_fallthru
          _
        // Predicated region
        $region37: #{tpu_custom_call.1} parent=19 // pred_check
          %p258 = pneg %p151
        $region38: #{tpu_custom_call.1} parent=19 // pred_check_branch
          %260 = sbr.rel (%p258) target = $region40
        $region39: #{tpu_custom_call.1} parent=19 // pred_region
          %p261 = scmp.lt.s32.totalorder %s23, 3
          %s262 = scalar_select %p261, %s23, 3
          %s263 = smul.addr %s262, 4
          %s264 = smul.addr %s263, 4
          %s265 = scalar_lea.vmem %s4, %s264
        $region40: #{tpu_custom_call.1} parent=19 // pred_fallthru
          _
      $region20: #{tpu_custom_call.1} parent=5 // pred_fallthru
        _
      %p266 = scmp.le.s32.totalorder 1, %s15
      %p267 = scmp.lt.s32.totalorder %s15, 9
      %p268 = pnand %p266, %p267
      %p269 = pneg %p268
      // Predicated region
      $region41: #{tpu_custom_call.1} parent=5 // pred_check
        _
      $region42: #{tpu_custom_call.1} parent=5 // pred_check_branch
        %271 = sbr.rel (%p268) target = $region44
      $region43: #{tpu_custom_call.1} parent=5 // pred_region
        %s272 = ssub.s32 %s15, 1
        %p273 = scmp.lt.s32.totalorder %s24, 1
        %s274 = scalar_select %p273, %s24, 1
        %s275 = smul.addr %s274, 8
        %s276 = smul.addr %s275, 8
        %s277 = scalar_lea.vmem %s0, %s276
        %p278 = pneg %p53
        %p279 = pneg %p50
        %p280 = scmp.lt.s32.totalorder %s25, 3
        %s281 = scalar_select %p280, %s25, 3
        %s282 = smul.addr %s281, 16
        %s283 = smul.addr %s282, 4
        %s284 = scalar_lea.vmem %s1, %s283
        %p285 = pneg %p79
        %p286 = pneg %p76
        %p287 = scmp.lt.s32.totalorder %s25, 3
        %s288 = scalar_select %p287, %s25, 3
        %s289 = smul.addr %s288, 16
        %s290 = smul.addr %s289, 4
        %s291 = scalar_lea.vmem %s2, %s290
        %p292 = pneg %p105
        %p293 = pneg %p102
        %p294 = scmp.lt.s32.totalorder %s25, 3
        %s295 = scalar_select %p294, %s25, 3
        %s296 = smul.addr %s295, 16
        %s297 = smul.addr %s296, 4
        %s298 = scalar_lea.vmem %s3, %s297
        %p299 = pneg %p131
        %p300 = pneg %p128
        %p301 = scmp.lt.s32.totalorder %s25, 3
        %s302 = scalar_select %p301, %s25, 3
        %s303 = smul.addr %s302, 4
        %s304 = smul.addr %s303, 4
        %s305 = scalar_lea.vmem %s4, %s304
        %p306 = pneg %p157
        %p307 = pneg %p154
        %p308 = pneg %p178
        %p309 = pneg %p175
        %p310 = pneg %p204
        %p311 = pneg %p201
        %s312 = sand.u32 %s191, 1
        %s313 = scalar_lea.sflag [#allocation4], %s312
        %s314 = sand.u32 %s191, 1
        %s315 = smul.addr %s314, 64
        %s316 = scalar_lea.vmem [#allocation3], %s315
        %p317 = scmp.lt.s32.totalorder %s24, 1
        %s318 = scalar_select %p317, %s24, 1
        %s319 = smul.addr %s318, 8
        %s320 = smul.addr %s319, 8
        %s321 = scalar_lea.vmem %s0, %s320
        %p322 = scmp.lt.s32.totalorder %s25, 3
        %s323 = scalar_select %p322, %s25, 3
        %s324 = smul.addr %s323, 16
        %s325 = smul.addr %s324, 4
        %s326 = scalar_lea.vmem %s1, %s325
        %p327 = scmp.lt.s32.totalorder %s25, 3
        %s328 = scalar_select %p327, %s25, 3
        %s329 = smul.addr %s328, 16
        %s330 = smul.addr %s329, 4
        %s331 = scalar_lea.vmem %s2, %s330
        %p332 = scmp.lt.s32.totalorder %s25, 3
        %s333 = scalar_select %p332, %s25, 3
        %s334 = smul.addr %s333, 16
        %s335 = smul.addr %s334, 4
        %s336 = scalar_lea.vmem %s3, %s335
        %p337 = scmp.lt.s32.totalorder %s25, 3
        %s338 = scalar_select %p337, %s25, 3
        %s339 = smul.addr %s338, 4
        %s340 = smul.addr %s339, 4
        %s341 = scalar_lea.vmem %s4, %s340
        %p343 = scmp.eq.s32.totalorder %s25, 0
        // Predicated region
        $region45: #{tpu_custom_call.1} parent=43 // pred_check
          %p344 = pneg %p343
        $region46: #{tpu_custom_call.1} parent=43 // pred_check_branch
          %346 = sbr.rel (%p344) target = $region48
        $region47: #{tpu_custom_call.1} parent=43 // pred_region
          %347 = vst [vmem:[#allocation2] sm:$0xff] 0.0
          %348 = vst [vmem:[#allocation2 + $0x8] sm:$0xff] 0.0
          %349 = vst [vmem:[#allocation2 + $0x10] sm:$0xff] 0.0
          %350 = vst [vmem:[#allocation2 + $0x18] sm:$0xff] 0.0
          %351 = vst [vmem:[#allocation2 + $0x20] sm:$0xff] 0.0
          %352 = vst [vmem:[#allocation2 + $0x28] sm:$0xff] 0.0
          %353 = vst [vmem:[#allocation2 + $0x30] sm:$0xff] 0.0
          %354 = vst [vmem:[#allocation2 + $0x38] sm:$0xff] 0.0
        $region48: #{tpu_custom_call.1} parent=43 // pred_fallthru
          _
        %v355 = vld [vmem:[%s321] sm:$0xff]
        %v356 = vld [vmem:[%s321 + $0x8] sm:$0xff]
        %v357 = vld [vmem:[%s321 + $0x10] sm:$0xff]
        %v358 = vld [vmem:[%s321 + $0x18] sm:$0xff]
        %v359 = vld [vmem:[%s321 + $0x20] sm:$0xff]
        %v360 = vld [vmem:[%s321 + $0x28] sm:$0xff]
        %v361 = vld [vmem:[%s321 + $0x30] sm:$0xff]
        %v362 = vld [vmem:[%s321 + $0x38] sm:$0xff]
        %v363 = vpack.c.bf16 %v356, %v355
        %v364 = vpack.c.bf16 %v358, %v357
        %v365 = vpack.c.bf16 %v360, %v359
        %v366 = vpack.c.bf16 %v362, %v361
        %v367 = vld [vmem:[%s326] sm:$0xf]
        %v368 = vld [vmem:[%s326 + $0x4] sm:$0xf]
        %v369 = vld [vmem:[%s326 + $0x8] sm:$0xf]
        %v370 = vld [vmem:[%s326 + $0xc] sm:$0xf]
        %v371 = vld [vmem:[%s326 + $0x10] sm:$0xf]
        %v372 = vld [vmem:[%s326 + $0x14] sm:$0xf]
        %v373 = vld [vmem:[%s326 + $0x18] sm:$0xf]
        %v374 = vld [vmem:[%s326 + $0x1c] sm:$0xf]
        %v375 = vld [vmem:[%s326 + $0x20] sm:$0xf]
        %v376 = vld [vmem:[%s326 + $0x24] sm:$0xf]
        %v377 = vld [vmem:[%s326 + $0x28] sm:$0xf]
        %v378 = vld [vmem:[%s326 + $0x2c] sm:$0xf]
        %v379 = vld [vmem:[%s326 + $0x30] sm:$0xf]
        %v380 = vld [vmem:[%s326 + $0x34] sm:$0xf]
        %v381 = vld [vmem:[%s326 + $0x38] sm:$0xf]
        %v382 = vld [vmem:[%s326 + $0x3c] sm:$0xf]
        %v383 = vld [vmem:[%s331] sm:$0xf]
        %v384 = vld [vmem:[%s331 + $0x4] sm:$0xf]
        %v385 = vld [vmem:[%s331 + $0x8] sm:$0xf]
        %v386 = vld [vmem:[%s331 + $0xc] sm:$0xf]
        %v387 = vld [vmem:[%s331 + $0x10] sm:$0xf]
        %v388 = vld [vmem:[%s331 + $0x14] sm:$0xf]
        %v389 = vld [vmem:[%s331 + $0x18] sm:$0xf]
        %v390 = vld [vmem:[%s331 + $0x1c] sm:$0xf]
        %v391 = vld [vmem:[%s331 + $0x20] sm:$0xf]
        %v392 = vld [vmem:[%s331 + $0x24] sm:$0xf]
        %v393 = vld [vmem:[%s331 + $0x28] sm:$0xf]
        %v394 = vld [vmem:[%s331 + $0x2c] sm:$0xf]
        %v395 = vld [vmem:[%s331 + $0x30] sm:$0xf]
        %v396 = vld [vmem:[%s331 + $0x34] sm:$0xf]
        %v397 = vld [vmem:[%s331 + $0x38] sm:$0xf]
        %v398 = vld [vmem:[%s331 + $0x3c] sm:$0xf]
        %v399 = vld [vmem:[%s336] sm:$0xf]
        %v400 = vld [vmem:[%s336 + $0x4] sm:$0xf]
        %v401 = vld [vmem:[%s336 + $0x8] sm:$0xf]
        %v402 = vld [vmem:[%s336 + $0xc] sm:$0xf]
        %v403 = vld [vmem:[%s336 + $0x10] sm:$0xf]
        %v404 = vld [vmem:[%s336 + $0x14] sm:$0xf]
        %v405 = vld [vmem:[%s336 + $0x18] sm:$0xf]
        %v406 = vld [vmem:[%s336 + $0x1c] sm:$0xf]
        %v407 = vld [vmem:[%s336 + $0x20] sm:$0xf]
        %v408 = vld [vmem:[%s336 + $0x24] sm:$0xf]
        %v409 = vld [vmem:[%s336 + $0x28] sm:$0xf]
        %v410 = vld [vmem:[%s336 + $0x2c] sm:$0xf]
        %v411 = vld [vmem:[%s336 + $0x30] sm:$0xf]
        %v412 = vld [vmem:[%s336 + $0x34] sm:$0xf]
        %v413 = vld [vmem:[%s336 + $0x38] sm:$0xf]
        %v414 = vld [vmem:[%s336 + $0x3c] sm:$0xf]
        %v415 = vld [vmem:[%s341] sm:$0xf]
        %v416 = vld [vmem:[%s341 + $0x4] sm:$0xf]
        %v417 = vld [vmem:[%s341 + $0x8] sm:$0xf]
        %v418 = vld [vmem:[%s341 + $0xc] sm:$0xf]
        %v435 = vunpack.c.l.b16 %v367
        %v436 = vunpack.c.l.b16 %v368
        %v437 = vunpack.c.l.b16 %v369
        %v438 = vunpack.c.l.b16 %v370
        %v439 = vunpack.c.l.b16 %v371
        %v440 = vunpack.c.l.b16 %v372
        %v441 = vunpack.c.l.b16 %v373
        %v442 = vunpack.c.l.b16 %v374
        %v443 = vunpack.c.l.b16 %v375
        %v444 = vunpack.c.l.b16 %v376
        %v445 = vunpack.c.l.b16 %v377
        %v446 = vunpack.c.l.b16 %v378
        %v447 = vunpack.c.l.b16 %v379
        %v448 = vunpack.c.l.b16 %v380
        %v449 = vunpack.c.l.b16 %v381
        %v450 = vunpack.c.l.b16 %v382
        %v451 = vpack.c.b16 %v436, %v435
        %v452 = vpack.c.b16 %v438, %v437
        %v453 = vpack.c.b16 %v440, %v439
        %v454 = vpack.c.b16 %v442, %v441
        %v455 = vpack.c.b16 %v444, %v443
        %v456 = vpack.c.b16 %v446, %v445
        %v457 = vpack.c.b16 %v448, %v447
        %v458 = vpack.c.b16 %v450, %v449
        %467 = vmatpush.bf16.msra.mxu0 %v458
        %468 = vmatpush.bf16.msra.mxu0 %v457
        %469 = vmatpush.bf16.msra.mxu0 %v456
        %470 = vmatpush.bf16.msra.mxu0 %v455
        %471 = vmatpush.bf16.msra.mxu0 %v454
        %472 = vmatpush.bf16.msra.mxu0 %v453
        %473 = vmatpush.bf16.msra.mxu0 %v452
        %474 = vmatpush.bf16.msra.mxu0 %v451
        %475 = vmatmul.bf16.gmra.mxu0 %v363
        %v476 = vpop.f32.mrf.mxu0
        %v477 = vadd.f32 0.0, %v476
        %v478 = vpop.f32.mrf.mxu0
        %v479 = vadd.f32 0.0, %v478
        %480 = vmatmul.bf16.gmra.mxu0 %v364
        %v481 = vpop.f32.mrf.mxu0
        %v482 = vadd.f32 0.0, %v481
        %v483 = vpop.f32.mrf.mxu0
        %v484 = vadd.f32 0.0, %v483
        %485 = vmatmul.bf16.gmra.mxu0 %v365
        %v486 = vpop.f32.mrf.mxu0
        %v487 = vadd.f32 0.0, %v486
        %v488 = vpop.f32.mrf.mxu0
        %v489 = vadd.f32 0.0, %v488
        %490 = vmatmul.bf16.gmra.mxu0 %v366
        %v491 = vpop.f32.mrf.mxu0
        %v492 = vadd.f32 0.0, %v491
        %v493 = vpop.f32.mrf.mxu0
        %v494 = vadd.f32 0.0, %v493
        %495 = vdwg.mxu0
        %v512 = vunpack.c.l.b16 %v383
        %v513 = vunpack.c.l.b16 %v384
        %v514 = vunpack.c.l.b16 %v385
        %v515 = vunpack.c.l.b16 %v386
        %v516 = vunpack.c.l.b16 %v387
        %v517 = vunpack.c.l.b16 %v388
        %v518 = vunpack.c.l.b16 %v389
        %v519 = vunpack.c.l.b16 %v390
        %v520 = vunpack.c.l.b16 %v391
        %v521 = vunpack.c.l.b16 %v392
        %v522 = vunpack.c.l.b16 %v393
        %v523 = vunpack.c.l.b16 %v394
        %v524 = vunpack.c.l.b16 %v395
        %v525 = vunpack.c.l.b16 %v396
        %v526 = vunpack.c.l.b16 %v397
        %v527 = vunpack.c.l.b16 %v398
        %v528 = vpack.c.b16 %v513, %v512
        %v529 = vpack.c.b16 %v515, %v514
        %v530 = vpack.c.b16 %v517, %v516
        %v531 = vpack.c.b16 %v519, %v518
        %v532 = vpack.c.b16 %v521, %v520
        %v533 = vpack.c.b16 %v523, %v522
        %v534 = vpack.c.b16 %v525, %v524
        %v535 = vpack.c.b16 %v527, %v526
        %544 = vmatpush.bf16.msra.mxu0 %v535
        %545 = vmatpush.bf16.msra.mxu0 %v534
        %546 = vmatpush.bf16.msra.mxu0 %v533
        %547 = vmatpush.bf16.msra.mxu0 %v532
        %548 = vmatpush.bf16.msra.mxu0 %v531
        %549 = vmatpush.bf16.msra.mxu0 %v530
        %550 = vmatpush.bf16.msra.mxu0 %v529
        %551 = vmatpush.bf16.msra.mxu0 %v528
        %552 = vmatmul.bf16.gmra.mxu0 %v363
        %v553 = vpop.f32.mrf.mxu0
        %v554 = vadd.f32 0.0, %v553
        %v555 = vpop.f32.mrf.mxu0
        %v556 = vadd.f32 0.0, %v555
        %557 = vmatmul.bf16.gmra.mxu0 %v364
        %v558 = vpop.f32.mrf.mxu0
        %v559 = vadd.f32 0.0, %v558
        %v560 = vpop.f32.mrf.mxu0
        %v561 = vadd.f32 0.0, %v560
        %562 = vmatmul.bf16.gmra.mxu0 %v365
        %v563 = vpop.f32.mrf.mxu0
        %v564 = vadd.f32 0.0, %v563
        %v565 = vpop.f32.mrf.mxu0
        %v566 = vadd.f32 0.0, %v565
        %567 = vmatmul.bf16.gmra.mxu0 %v366
        %v568 = vpop.f32.mrf.mxu0
        %v569 = vadd.f32 0.0, %v568
        %v570 = vpop.f32.mrf.mxu0
        %v571 = vadd.f32 0.0, %v570
        %572 = vdwg.mxu0
        %v589 = vunpack.c.l.b16 %v399
        %v590 = vunpack.c.l.b16 %v400
        %v591 = vunpack.c.l.b16 %v401
        %v592 = vunpack.c.l.b16 %v402
        %v593 = vunpack.c.l.b16 %v403
        %v594 = vunpack.c.l.b16 %v404
        %v595 = vunpack.c.l.b16 %v405
        %v596 = vunpack.c.l.b16 %v406
        %v597 = vunpack.c.l.b16 %v407
        %v598 = vunpack.c.l.b16 %v408
        %v599 = vunpack.c.l.b16 %v409
        %v600 = vunpack.c.l.b16 %v410
        %v601 = vunpack.c.l.b16 %v411
        %v602 = vunpack.c.l.b16 %v412
        %v603 = vunpack.c.l.b16 %v413
        %v604 = vunpack.c.l.b16 %v414
        %v605 = vpack.c.b16 %v590, %v589
        %v606 = vpack.c.b16 %v592, %v591
        %v607 = vpack.c.b16 %v594, %v593
        %v608 = vpack.c.b16 %v596, %v595
        %v609 = vpack.c.b16 %v598, %v597
        %v610 = vpack.c.b16 %v600, %v599
        %v611 = vpack.c.b16 %v602, %v601
        %v612 = vpack.c.b16 %v604, %v603
        %621 = vmatpush.bf16.msra.mxu0 %v612
        %622 = vmatpush.bf16.msra.mxu0 %v611
        %623 = vmatpush.bf16.msra.mxu0 %v610
        %624 = vmatpush.bf16.msra.mxu0 %v609
        %625 = vmatpush.bf16.msra.mxu0 %v608
        %626 = vmatpush.bf16.msra.mxu0 %v607
        %627 = vmatpush.bf16.msra.mxu0 %v606
        %628 = vmatpush.bf16.msra.mxu0 %v605
        %629 = vmatmul.bf16.gmra.mxu0 %v363
        %v630 = vpop.f32.mrf.mxu0
        %v631 = vadd.f32 0.0, %v630
        %v632 = vpop.f32.mrf.mxu0
        %v633 = vadd.f32 0.0, %v632
        %634 = vmatmul.bf16.gmra.mxu0 %v364
        %v635 = vpop.f32.mrf.mxu0
        %v636 = vadd.f32 0.0, %v635
        %v637 = vpop.f32.mrf.mxu0
        %v638 = vadd.f32 0.0, %v637
        %639 = vmatmul.bf16.gmra.mxu0 %v365
        %v640 = vpop.f32.mrf.mxu0
        %v641 = vadd.f32 0.0, %v640
        %v642 = vpop.f32.mrf.mxu0
        %v643 = vadd.f32 0.0, %v642
        %644 = vmatmul.bf16.gmra.mxu0 %v366
        %v645 = vpop.f32.mrf.mxu0
        %v646 = vadd.f32 0.0, %v645
        %v647 = vpop.f32.mrf.mxu0
        %v648 = vadd.f32 0.0, %v647
        %649 = vdwg.mxu0
        %v650 = vpack.c.bf16 %v479, %v477
        %v651 = vpack.c.bf16 %v484, %v482
        %v652 = vpack.c.bf16 %v489, %v487
        %v653 = vpack.c.bf16 %v494, %v492
        %v654 = vpack.c.bf16 %v556, %v554
        %v655 = vpack.c.bf16 %v561, %v559
        %v656 = vpack.c.bf16 %v566, %v564
        %v657 = vpack.c.bf16 %v571, %v569
        %vm658 = vcmask 261120
        %v660 = vsel %vm658, %v650, 0
        %v663 = vsel %vm658, %v651, 0
        %v666 = vsel %vm658, %v652, 0
        %v669 = vsel %vm658, %v653, 0
        %v672 = vsel %vm658, %v654, 0
        %v675 = vsel %vm658, %v655, 0
        %v678 = vsel %vm658, %v656, 0
        %v681 = vsel %vm658, %v657, 0
        %683 = vmatpush.bf16.xpose.msra.mxu0 0
        %684 = vmatpush.bf16.xpose.msra.mxu0 0
        %685 = vmatpush.bf16.xpose.msra.mxu0 0
        %686 = vmatpush.bf16.xpose.msra.mxu0 0
        %687 = vmatpush.bf16.xpose.msra.mxu0 %v681
        %688 = vmatpush.bf16.xpose.msra.mxu0 %v678
        %689 = vmatpush.bf16.xpose.msra.mxu0 %v675
        %690 = vmatpush.bf16.xpose.msra.mxu0 %v672
        %691 = vmatmul.bf16.gmra.mxu0 %v660
        %v692 = vpop.f32.mrf.mxu0
        %v693 = vadd.f32 0.0, %v692
        %v694 = vpop.f32.mrf.mxu0
        %v695 = vadd.f32 0.0, %v694
        %696 = vmatmul.bf16.gmra.mxu0 %v663
        %v697 = vpop.f32.mrf.mxu0
        %v698 = vadd.f32 0.0, %v697
        %v699 = vpop.f32.mrf.mxu0
        %v700 = vadd.f32 0.0, %v699
        %701 = vmatmul.bf16.gmra.mxu0 %v666
        %v702 = vpop.f32.mrf.mxu0
        %v703 = vadd.f32 0.0, %v702
        %v704 = vpop.f32.mrf.mxu0
        %v705 = vadd.f32 0.0, %v704
        %706 = vmatmul.bf16.gmra.mxu0 %v669
        %v707 = vpop.f32.mrf.mxu0
        %v708 = vadd.f32 0.0, %v707
        %v709 = vpop.f32.mrf.mxu0
        %v710 = vadd.f32 0.0, %v709
        %711 = vdwg.mxu0
        %vm712 = vcmask 523264
        %v713 = vsel %vm712, %v693, -inf
        %714 = vmax.xlane.f32.xlu0 %v713
        %v715 = vpop.xlane.xlu0 %714
        %v716 = vsel %vm712, %v695, -inf
        %717 = vmax.xlane.f32.xlu0 %v716
        %v718 = vpop.xlane.xlu0 %717
        %v719 = vsel %vm712, %v698, -inf
        %720 = vmax.xlane.f32.xlu0 %v719
        %v721 = vpop.xlane.xlu0 %720
        %v722 = vsel %vm712, %v700, -inf
        %723 = vmax.xlane.f32.xlu0 %v722
        %v724 = vpop.xlane.xlu0 %723
        %v725 = vsel %vm712, %v703, -inf
        %726 = vmax.xlane.f32.xlu0 %v725
        %v727 = vpop.xlane.xlu0 %726
        %v728 = vsel %vm712, %v705, -inf
        %729 = vmax.xlane.f32.xlu0 %v728
        %v730 = vpop.xlane.xlu0 %729
        %v731 = vsel %vm712, %v708, -inf
        %732 = vmax.xlane.f32.xlu0 %v731
        %v733 = vpop.xlane.xlu0 %732
        %v734 = vsel %vm712, %v710, -inf
        %735 = vmax.xlane.f32.xlu0 %v734
        %v736 = vpop.xlane.xlu0 %735
        %v737 = vsub.f32 %v693, %v715
        %v738 = vsub.f32 %v695, %v718
        %v739 = vsub.f32 %v698, %v721
        %v740 = vsub.f32 %v700, %v724
        %v741 = vsub.f32 %v703, %v727
        %v742 = vsub.f32 %v705, %v730
        %v743 = vsub.f32 %v708, %v733
        %v744 = vsub.f32 %v710, %v736
        %v745 = vmul.f32 %v737, 1.442695
        %v746 = vpow.pop %v745
        %v747 = vmul.f32 %v738, 1.442695
        %v748 = vpow.pop %v747
        %v749 = vmul.f32 %v739, 1.442695
        %v750 = vpow.pop %v749
        %v751 = vmul.f32 %v740, 1.442695
        %v752 = vpow.pop %v751
        %v753 = vmul.f32 %v741, 1.442695
        %v754 = vpow.pop %v753
        %v755 = vmul.f32 %v742, 1.442695
        %v756 = vpow.pop %v755
        %v757 = vmul.f32 %v743, 1.442695
        %v758 = vpow.pop %v757
        %v759 = vmul.f32 %v744, 1.442695
        %v760 = vpow.pop %v759
        %v761 = vsel %vm712, %v746, 0.0
        %762 = vadd.xlane.f32.xlu0 %v761
        %v763 = vpop.xlane.xlu0 %762
        %v764 = vsel %vm712, %v748, 0.0
        %765 = vadd.xlane.f32.xlu0 %v764
        %v766 = vpop.xlane.xlu0 %765
        %v767 = vsel %vm712, %v750, 0.0
        %768 = vadd.xlane.f32.xlu0 %v767
        %v769 = vpop.xlane.xlu0 %768
        %v770 = vsel %vm712, %v752, 0.0
        %771 = vadd.xlane.f32.xlu0 %v770
        %v772 = vpop.xlane.xlu0 %771
        %v773 = vsel %vm712, %v754, 0.0
        %774 = vadd.xlane.f32.xlu0 %v773
        %v775 = vpop.xlane.xlu0 %774
        %v776 = vsel %vm712, %v756, 0.0
        %777 = vadd.xlane.f32.xlu0 %v776
        %v778 = vpop.xlane.xlu0 %777
        %v779 = vsel %vm712, %v758, 0.0
        %780 = vadd.xlane.f32.xlu0 %v779
        %v781 = vpop.xlane.xlu0 %780
        %v782 = vsel %vm712, %v760, 0.0
        %783 = vadd.xlane.f32.xlu0 %v782
        %v784 = vpop.xlane.xlu0 %783
        %v785 = vrcp.pop %v763
        %v786 = vrcp.pop %v766
        %v787 = vrcp.pop %v769
        %v788 = vrcp.pop %v772
        %v789 = vrcp.pop %v775
        %v790 = vrcp.pop %v778
        %v791 = vrcp.pop %v781
        %v792 = vrcp.pop %v784
        %v793 = vmul.f32 %v746, %v785
        %v794 = vmul.f32 %v748, %v786
        %v795 = vmul.f32 %v750, %v787
        %v796 = vmul.f32 %v752, %v788
        %v797 = vmul.f32 %v754, %v789
        %v798 = vmul.f32 %v756, %v790
        %v799 = vmul.f32 %v758, %v791
        %v800 = vmul.f32 %v760, %v792
        %v801 = vpack.c.bf16 %v794, %v793
        %v802 = vpack.c.bf16 %v796, %v795
        %v803 = vpack.c.bf16 %v798, %v797
        %v804 = vpack.c.bf16 %v800, %v799
        %v805 = vpack.c.bf16 %v633, %v631
        %v806 = vpack.c.bf16 %v638, %v636
        %v807 = vpack.c.bf16 %v643, %v641
        %v808 = vpack.c.bf16 %v648, %v646
        %v810 = vsel %vm712, %v801, 0
        %v813 = vsel %vm712, %v802, 0
        %v816 = vsel %vm712, %v803, 0
        %v819 = vsel %vm712, %v804, 0
        %821 = vmatpush.bf16.msra.mxu0 0
        %822 = vmatpush.bf16.msra.mxu0 0
        %823 = vmatpush.bf16.msra.mxu0 0
        %824 = vmatpush.bf16.msra.mxu0 0
        %825 = vmatpush.bf16.msra.mxu0 %v808
        %826 = vmatpush.bf16.msra.mxu0 %v807
        %827 = vmatpush.bf16.msra.mxu0 %v806
        %828 = vmatpush.bf16.msra.mxu0 %v805
        %829 = vmatmul.bf16.gmra.mxu0 %v810
        %v830 = vpop.f32.mrf.mxu0
        %v831 = vadd.f32 0.0, %v830
        %v832 = vpop.f32.mrf.mxu0
        %v833 = vadd.f32 0.0, %v832
        %834 = vmatmul.bf16.gmra.mxu0 %v813
        %v835 = vpop.f32.mrf.mxu0
        %v836 = vadd.f32 0.0, %v835
        %v837 = vpop.f32.mrf.mxu0
        %v838 = vadd.f32 0.0, %v837
        %839 = vmatmul.bf16.gmra.mxu0 %v816
        %v840 = vpop.f32.mrf.mxu0
        %v841 = vadd.f32 0.0, %v840
        %v842 = vpop.f32.mrf.mxu0
        %v843 = vadd.f32 0.0, %v842
        %844 = vmatmul.bf16.gmra.mxu0 %v819
        %v845 = vpop.f32.mrf.mxu0
        %v846 = vadd.f32 0.0, %v845
        %v847 = vpop.f32.mrf.mxu0
        %v848 = vadd.f32 0.0, %v847
        %849 = vdwg.mxu0
        %v850 = vld [vmem:[#allocation2] sm:$0xff]
        %v851 = vld [vmem:[#allocation2 + $0x8] sm:$0xff]
        %v852 = vld [vmem:[#allocation2 + $0x10] sm:$0xff]
        %v853 = vld [vmem:[#allocation2 + $0x18] sm:$0xff]
        %v854 = vld [vmem:[#allocation2 + $0x20] sm:$0xff]
        %v855 = vld [vmem:[#allocation2 + $0x28] sm:$0xff]
        %v856 = vld [vmem:[#allocation2 + $0x30] sm:$0xff]
        %v857 = vld [vmem:[#allocation2 + $0x38] sm:$0xff]
        %v858 = vpack.c.bf16 %v833, %v831
        %v859 = vpack.c.bf16 %v838, %v836
        %v860 = vpack.c.bf16 %v843, %v841
        %v861 = vpack.c.bf16 %v848, %v846
        %v866 = vunpack.c.l.b16 %v415
        %v867 = vunpack.c.l.b16 %v416
        %v868 = vunpack.c.l.b16 %v417
        %v869 = vunpack.c.l.b16 %v418
        %v870 = vpack.c.b16 %v867, %v866
        %v871 = vpack.c.b16 %v869, %v868
        %v875 = vsel %vm658, %v858, 0
        %v878 = vsel %vm658, %v859, 0
        %v881 = vsel %vm658, %v860, 0
        %v884 = vsel %vm658, %v861, 0
        %886 = vmatpush.bf16.msra.mxu0 0
        %887 = vmatpush.bf16.msra.mxu0 0
        %888 = vmatpush.bf16.msra.mxu0 0
        %889 = vmatpush.bf16.msra.mxu0 0
        %890 = vmatpush.bf16.msra.mxu0 0
        %891 = vmatpush.bf16.msra.mxu0 0
        %892 = vmatpush.bf16.msra.mxu0 %v871
        %893 = vmatpush.bf16.msra.mxu0 %v870
        %894 = vmatmul.bf16.gmra.mxu0 %v875
        %v895 = vpop.f32.mrf.mxu0
        %v896 = vadd.f32 0.0, %v895
        %v897 = vpop.f32.mrf.mxu0
        %v898 = vadd.f32 0.0, %v897
        %899 = vmatmul.bf16.gmra.mxu0 %v878
        %v900 = vpop.f32.mrf.mxu0
        %v901 = vadd.f32 0.0, %v900
        %v902 = vpop.f32.mrf.mxu0
        %v903 = vadd.f32 0.0, %v902
        %904 = vmatmul.bf16.gmra.mxu0 %v881
        %v905 = vpop.f32.mrf.mxu0
        %v906 = vadd.f32 0.0, %v905
        %v907 = vpop.f32.mrf.mxu0
        %v908 = vadd.f32 0.0, %v907
        %909 = vmatmul.bf16.gmra.mxu0 %v884
        %v910 = vpop.f32.mrf.mxu0
        %v911 = vadd.f32 0.0, %v910
        %v912 = vpop.f32.mrf.mxu0
        %v913 = vadd.f32 0.0, %v912
        %914 = vdwg.mxu0
        %v915 = vadd.f32 %v850, %v896
        %v916 = vadd.f32 %v851, %v898
        %v917 = vadd.f32 %v852, %v901
        %v918 = vadd.f32 %v853, %v903
        %v919 = vadd.f32 %v854, %v906
        %v920 = vadd.f32 %v855, %v908
        %v921 = vadd.f32 %v856, %v911
        %v922 = vadd.f32 %v857, %v913
        %923 = vst [vmem:[#allocation2] sm:$0xff] %v915
        %924 = vst [vmem:[#allocation2 + $0x8] sm:$0xff] %v916
        %925 = vst [vmem:[#allocation2 + $0x10] sm:$0xff] %v917
        %926 = vst [vmem:[#allocation2 + $0x18] sm:$0xff] %v918
        %927 = vst [vmem:[#allocation2 + $0x20] sm:$0xff] %v919
        %928 = vst [vmem:[#allocation2 + $0x28] sm:$0xff] %v920
        %929 = vst [vmem:[#allocation2 + $0x30] sm:$0xff] %v921
        %930 = vst [vmem:[#allocation2 + $0x38] sm:$0xff] %v922
        %p931 = scmp.eq.s32.totalorder %s25, 3
        // Predicated region
        $region49: #{tpu_custom_call.1} parent=43 // pred_check
          %p932 = pneg %p931
        $region50: #{tpu_custom_call.1} parent=43 // pred_check_branch
          %934 = sbr.rel (%p932) target = $region52
        $region51: #{tpu_custom_call.1} parent=43 // pred_region
          %v935 = vld [vmem:[#allocation2] sm:$0xff]
          %v936 = vld [vmem:[#allocation2 + $0x8] sm:$0xff]
          %v937 = vld [vmem:[#allocation2 + $0x10] sm:$0xff]
          %v938 = vld [vmem:[#allocation2 + $0x18] sm:$0xff]
          %v939 = vld [vmem:[#allocation2 + $0x20] sm:$0xff]
          %v940 = vld [vmem:[#allocation2 + $0x28] sm:$0xff]
          %v941 = vld [vmem:[#allocation2 + $0x30] sm:$0xff]
          %v942 = vld [vmem:[#allocation2 + $0x38] sm:$0xff]
          %v943 = vld [vmem:[%s5] sm:$0x1]
          %v945 = vperm.slane %v943, 0
          %v947 = vadd.f32 %v935, %v945
          %v948 = vadd.f32 %v936, %v945
          %v949 = vadd.f32 %v937, %v945
          %v950 = vadd.f32 %v938, %v945
          %v951 = vadd.f32 %v939, %v945
          %v952 = vadd.f32 %v940, %v945
          %v953 = vadd.f32 %v941, %v945
          %v954 = vadd.f32 %v942, %v945
          %955 = vst [vmem:[%s316] sm:$0xff] %v947
          %956 = vst [vmem:[%s316 + $0x8] sm:$0xff] %v948
          %957 = vst [vmem:[%s316 + $0x10] sm:$0xff] %v949
          %958 = vst [vmem:[%s316 + $0x18] sm:$0xff] %v950
          %959 = vst [vmem:[%s316 + $0x20] sm:$0xff] %v951
          %960 = vst [vmem:[%s316 + $0x28] sm:$0xff] %v952
          %961 = vst [vmem:[%s316 + $0x30] sm:$0xff] %v953
          %962 = vst [vmem:[%s316 + $0x38] sm:$0xff] %v954
        $region52: #{tpu_custom_call.1} parent=43 // pred_fallthru
          _
        %s963 = sand.u32 %s191, 1
        %s964 = scalar_lea.sflag [#allocation4], %s963
        %s965 = sand.u32 %s191, 1
        %s966 = smul.addr %s965, 64
        %s967 = scalar_lea.vmem [#allocation3], %s966
        // Predicated region
        $region53: #{tpu_custom_call.1} parent=43 // pred_check
          %p968 = pneg %p201
        $region54: #{tpu_custom_call.1} parent=43 // pred_check_branch
          %970 = sbr.rel (%p968) target = $region56
        $region55: #{tpu_custom_call.1} parent=43 // pred_region
          %972 = vsyncadd %s964, 0
          %s973 = smul.addr %s24, 8
          %s974 = smul.addr %s973, 8
          %s975 = scalar_lea.hbm %s6, %s974
          %s976 = sshll.u32 %s967, 4
          %s977 = int_to_ptr.vmem [resolvable:$true] %s976
          %s978 = sshll.u32 %s975, 4
          %s979 = int_to_ptr.hbm [resolvable:$true] %s978
          %984 = dma.vmem_to_hbm [thread:$0]  %s977, 1024, %s979, %s964, 128, 128, 8
        $region56: #{tpu_custom_call.1} parent=43 // pred_fallthru
          _
      $region44: #{tpu_custom_call.1} parent=5 // pred_fallthru
        _
      %p985 = scmp.le.s32.totalorder 2, %s15
      // Predicated region
      $region57: #{tpu_custom_call.1} parent=5 // pred_check
        %p986 = pneg %p985
      $region58: #{tpu_custom_call.1} parent=5 // pred_check_branch
        %988 = sbr.rel (%p986) target = $region60
      $region59: #{tpu_custom_call.1} parent=5 // pred_region
        %s989 = ssub.s32 %s15, 2
        // Predicated region
        $region61: #{tpu_custom_call.1} parent=59 // pred_check
          %p990 = pneg %p207
        $region62: #{tpu_custom_call.1} parent=59 // pred_check_branch
          %992 = sbr.rel (%p990) target = $region64
        $region63: #{tpu_custom_call.1} parent=59 // pred_region
          %s993 = sand.u32 %s192, 1
          %s994 = scalar_lea.sflag [#allocation4], %s993
          %s995 = sand.u32 %s192, 1
          %s996 = smul.addr %s995, 64
          %s997 = scalar_lea.vmem [#allocation3], %s996
          %999 = dma.done %s994, 1024
        $region64: #{tpu_custom_call.1} parent=59 // pred_fallthru
          _
      $region60: #{tpu_custom_call.1} parent=5 // pred_fallthru
        _
    $region6: #{tpu_custom_call.1} parent=1 // loop_footer
      %s19 = sadd.s32 1, %s15
    $region7: #{tpu_custom_call.1} parent=1 // loop_footer_branch
      %14 = sbr.rel target = $region3
    $region8: #{tpu_custom_call.1} parent=1 // loop_exit
      _
    %1000 = vsyncpa [#allocation4], 1
    %s1001 = scalar_lea.sflag [#allocation4], 1
    %1002 = vsyncpa %s1001, 1

</llo_original>
